<compile_context>
chip_gen: v7x
topology: tpu7x:2x2x1
jax: 0.10.0
libtpu: 0.0.40
codegen_flags: <defaults>
</compile_context>

<pallas_src>
import functools
import numbers

import jax
import jax.numpy as jnp
from jax.experimental import pallas as pl
from jax.experimental.pallas import tpu as pltpu


def _round_up(x, m):
    return ((x + m - 1) // m) * m


def _fea_kernel(*refs, beta, bound, n_valid, tile, lane_major, mask_pad):
    """One grid step of the streaming free-energy-alignment reduction.

    refs = ([bound_ref,] x_ref, out_ref)
      x_ref   : (C, TILE) native dtype if lane_major else (TILE, C)
      out_ref : (1, 1) f32 resident running sum (becomes the mean on the last step)
    """
    if bound is None:
        bound_ref, x_ref, out_ref = refs
        bound_val = bound_ref[0]
    else:
        x_ref, out_ref = refs
        bound_val = jnp.float32(bound)

    i = pl.program_id(0)

    @pl.when(i == 0)
    def _init():
        out_ref[...] = jnp.zeros_like(out_ref)

    x = x_ref[...].astype(jnp.float32)          # stream native dtype, upcast in-kernel
    class_axis = 0 if lane_major else 1

    # free_energy = -logsumexp(-beta * x, class_axis) / beta
    #             = min(x) - log(sum(exp(-beta * (x - min(x))))) / beta
    # (the -beta scale is folded into the max: max(-beta*x) = -beta*min(x))
    m_x = jnp.min(x, axis=class_axis, keepdims=True)
    s = jnp.sum(jnp.exp(-beta * (x - m_x)), axis=class_axis, keepdims=True)
    free_energy = m_x - jnp.log(s) * (1.0 / beta)        # (1, TILE) or (TILE, 1)

    # bound_max_loss: mean(max(free_energy - bound, 0))
    contrib = jnp.maximum(free_energy - bound_val, 0.0)

    if mask_pad:
        # Only the sample axis can be padded (the class axis is always full
        # extent); masking the small per-sample vector is enough — pad garbage
        # (even NaN/Inf) never crosses samples and `where` discards the
        # unselected branch.
        sample_axis = 1 if lane_major else 0
        ids = i * tile + jax.lax.broadcasted_iota(
            jnp.int32, free_energy.shape, sample_axis)
        contrib = jnp.where(ids < n_valid, contrib, 0.0)

    out_ref[...] += jnp.sum(contrib, keepdims=True)      # (1, 1) running sum

    @pl.when(i == pl.num_programs(0) - 1)
    def _finalize():
        out_ref[...] = out_ref[...] / jnp.float32(n_valid)


def free_energy_alignment_loss(inputs, bound, beta, *, tile=None):
    """Pallas TPU implementation of FreeEnergyAlignmentLoss(type='max').forward.

    inputs: (N, C) logits (any float dtype; streamed in native dtype).
    bound : Python/numpy scalar (baked into the kernel) or jax scalar (SMEM).
    beta  : Python float > 0.
    """
    assert beta > 0, "beta for energy calculate must be larger than 0"
    n, c = inputs.shape
    itemsize = jnp.dtype(inputs.dtype).itemsize

    # Small class counts (the typical FEDAL regime, C ~ 10..65) are processed in
    # a lane-dense (C, TILE) transposed layout: samples sit on the 128-wide lane
    # axis, so vregs are fully packed and the DMA into VMEM is dense.
    lane_major = c < 128

    # Per-step VMEM footprint budget: double-buffered native-dtype input tile
    # plus ~3 f32-sized in-kernel temporaries (upcast copy, exp intermediate,
    # slack).  128-MiB-VMEM parts (v4/v5e/v6e) get a bigger budget than v7x.
    try:
        kind = jax.devices()[0].device_kind.lower()
    except Exception:  # defensive: fall back to the conservative budget
        kind = ""
    big_vmem = any(t in kind for t in ("v4", "v5", "v6"))
    footprint_budget = (24 if big_vmem else 12) * 1024 * 1024
    vmem_limit = (64 if big_vmem else 32) * 1024 * 1024

    sub = max(8, 32 // itemsize)      # sublane granule for the native dtype

    if lane_major:
        x2 = inputs.T                 # (C, N); producers may hand this in directly
        per_sample = 2 * _round_up(c, sub) * itemsize + 3 * _round_up(c, 8) * 4
        if tile is None:
            tile = max(128, (footprint_budget // per_sample) // 128 * 128)
        tile = int(tile)
        if tile >= n:
            tile = n                  # single full-extent tile (any N allowed)
        else:
            tile = max(128, tile // 128 * 128)
        block = (c, tile)
        index_map = lambda i: (0, i)
    else:
        x2 = inputs                   # (N, C); C already lane-dense
        c_lanes = _round_up(c, 128)
        per_sample = 2 * c_lanes * itemsize + 3 * c_lanes * 4
        if tile is None:
            tile = max(8, (footprint_budget // per_sample) // 8 * 8)
        tile = int(tile)
        if tile >= n:
            tile = n
        else:
            tile = max(8, tile // 8 * 8)
        block = (tile, c)
        index_map = lambda i: (i, 0)

    num_tiles = pl.cdiv(n, tile)
    mask_pad = (n % tile) != 0        # only then can the last tile carry pad samples

    # Bake a static bound straight into the kernel; SMEM only for traced bounds.
    if isinstance(bound, jax.Array):
        bound_static = None
    elif isinstance(bound, numbers.Number):
        bound_static = float(bound)
    else:
        bound_static = float(bound)   # numpy 0-d arrays etc.

    kernel = functools.partial(
        _fea_kernel, beta=float(beta), bound=bound_static, n_valid=n,
        tile=tile, lane_major=lane_major, mask_pad=mask_pad)

    in_specs = []
    operands = []
    if bound_static is None:
        in_specs.append(pl.BlockSpec(memory_space=pltpu.MemorySpace.SMEM))
        operands.append(jnp.asarray(bound, dtype=jnp.float32).reshape(1))
    in_specs.append(pl.BlockSpec(block, index_map))
    operands.append(x2)

    cost = pl.CostEstimate(
        flops=6 * n * c,                  # min, sub, mul, add, log, relu, ...
        transcendentals=n * c + n,        # exp per element + log per sample
        bytes_accessed=n * c * itemsize + 8,
    )

    # TODO(synk): on v7x a 2-D grid (CORE_PARALLEL leading axis with per-core
    # partial accumulators summed in the wrapper) would use both TensorCores;
    # kept single-core here for portability across v5e/v6e/v7x.
    out = pl.pallas_call(
        kernel,
        out_shape=jax.ShapeDtypeStruct((1, 1), jnp.float32),
        grid=(num_tiles,),
        in_specs=in_specs,
        out_specs=pl.BlockSpec((1, 1), lambda i: (0, 0)),   # resident accumulator
        compiler_params=pltpu.CompilerParams(
            dimension_semantics=("arbitrary",),
            vmem_limit_bytes=vmem_limit,
        ),
        cost_estimate=cost,
    )(*operands)
    return out[0, 0]


def _reference_fea_loss(inputs, bound, beta):
    x = inputs.astype(jnp.float32)
    log_sum_exp = jax.nn.logsumexp(-1.0 * beta * x, axis=1)
    free_energies = -1.0 * log_sum_exp / beta
    return jnp.mean(jnp.maximum(free_energies - jnp.float32(bound), 0.0))


if __name__ == "__main__":
    key = jax.random.PRNGKey(0)
    k1, k2, k3 = jax.random.split(key, 3)

    # Test 1: typical small FEDAL batch, small class count (lane-dense path,
    # single full-extent tile, static Python bound baked into the kernel).
    N1, C1, beta1, bound1 = 8, 16, 0.5, -5.7
    x1 = jax.random.normal(k1, (N1, C1), dtype=jnp.float32)
    out1 = jax.block_until_ready(free_energy_alignment_loss(x1, bound1, beta1))
    ref1 = _reference_fea_loss(x1, bound1, beta1)
    assert jnp.allclose(out1, ref1, atol=1e-5, rtol=1e-5), (out1, ref1)

    # Test 2: lane-dense path with bf16 inputs, multiple 128-wide tiles with a
    # padded final tile, and a traced (jax scalar) bound via the SMEM path.
    N2, C2, beta2, bound2 = 300, 10, 1.0, jnp.float32(-2.0)
    x2 = jax.random.normal(k2, (N2, C2)).astype(jnp.bfloat16)
    out2 = jax.block_until_ready(
        free_energy_alignment_loss(x2, bound2, beta2, tile=128))
    ref2 = _reference_fea_loss(x2, bound2, beta2)
    assert jnp.allclose(out2, ref2, atol=1e-4, rtol=1e-4), (out2, ref2)

    # Test 3: large class count -> row-major (N, C) path with a padded last
    # row tile (forced small tile to cover the multi-step resident accumulator).
    N3, C3, beta3, bound3 = 20, 256, 1.0, -5.0
    x3 = jax.random.normal(k3, (N3, C3), dtype=jnp.float32)
    out3 = jax.block_until_ready(
        free_energy_alignment_loss(x3, bound3, beta3, tile=8))
    ref3 = _reference_fea_loss(x3, bound3, beta3)
    assert jnp.allclose(out3, ref3, atol=1e-5, rtol=1e-5), (out3, ref3)

    print("KERNEL_OK")
</pallas_src>

<mosaic_0001>
module attributes {stable_mosaic.version = 11 : i64} {
  func.func @_fea_kernel(%arg0: i32, %arg1: memref<16x8xf32, #tpu.memory_space<vmem>>, %arg2: memref<1x1xf32, #tpu.memory_space<vmem>>) attributes {dimension_semantics = [#tpu.dimension_semantics<arbitrary>], iteration_bounds = array<i64: 1>, scalar_prefetch = 0 : i64, scratch_operands = 0 : i64, tpu.core_type = #tpu.core_type<tc>, window_params = [{transform_indices = @transform_0, window_bounds = array<i64: 16, 8>}, {pipeline_mode = #tpu.pipeline_mode<synchronous>, transform_indices = @transform_1, window_bounds = array<i64: 1, 1>}]} {
    %c0_i32 = arith.constant 0 : i32
    %0 = arith.cmpi eq, %arg0, %c0_i32 : i32
    %1 = arith.extui %0 : i1 to i32
    %c0_i32_0 = arith.constant 0 : i32
    %2 = arith.cmpi ne, %1, %c0_i32_0 : i32
    scf.if %2 {
      %cst_14 = arith.constant 0.000000e+00 : f32
      %32 = vector.broadcast %cst_14 : f32 to vector<1x1xf32>
      %c0_15 = arith.constant 0 : index
      %c0_16 = arith.constant 0 : index
      %33 = vector.load %arg2[%c0_15, %c0_16] : memref<1x1xf32, #tpu.memory_space<vmem>>, vector<1x1xf32>
      tpu.vector_store %arg2[%c0_15, %c0_16], %32 {strides = array<i32>} : memref<1x1xf32, #tpu.memory_space<vmem>>, vector<1x1xf32>,
    } else {
    }
    %c0 = arith.constant 0 : index
    %c0_1 = arith.constant 0 : index
    %3 = vector.load %arg1[%c0, %c0_1] : memref<16x8xf32, #tpu.memory_space<vmem>>, vector<16x8xf32>
    %cst = arith.constant dense<0x7F800000> : vector<8xf32>
    %4 = vector.multi_reduction <minimumf>, %3, %cst [0] : vector<16x8xf32> to vector<8xf32>
    %5 = vector.shape_cast %4 : vector<8xf32> to vector<1x8xf32>
    %6 = vector.broadcast %5 : vector<1x8xf32> to vector<16x8xf32>
    %7 = arith.subf %3, %6 : vector<16x8xf32>
    %cst_2 = arith.constant -5.000000e-01 : f32
    %8 = vector.broadcast %cst_2 : f32 to vector<16x8xf32>
    %9 = arith.mulf %8, %7 : vector<16x8xf32>
    %10 = math.exp %9 : vector<16x8xf32>
    %cst_3 = arith.constant dense<0.000000e+00> : vector<8xf32>
    %11 = vector.multi_reduction <add>, %10, %cst_3 [0] : vector<16x8xf32> to vector<8xf32>
    %12 = vector.shape_cast %11 : vector<8xf32> to vector<1x8xf32>
    %13 = math.log %12 : vector<1x8xf32>
    %cst_4 = arith.constant 2.000000e+00 : f32
    %14 = vector.broadcast %cst_4 : f32 to vector<1x8xf32>
    %15 = arith.mulf %13, %14 : vector<1x8xf32>
    %16 = arith.subf %5, %15 : vector<1x8xf32>
    %cst_5 = arith.constant -5.700000e+00 : f32
    %17 = vector.broadcast %cst_5 : f32 to vector<1x8xf32>
    %18 = arith.subf %16, %17 : vector<1x8xf32>
    %cst_6 = arith.constant 0.000000e+00 : f32
    %19 = vector.broadcast %cst_6 : f32 to vector<1x8xf32>
    %20 = arith.maximumf %18, %19 : vector<1x8xf32>
    %c0_7 = arith.constant 0 : index
    %c0_8 = arith.constant 0 : index
    %21 = vector.load %arg2[%c0_7, %c0_8] : memref<1x1xf32, #tpu.memory_space<vmem>>, vector<1x1xf32>
    %22 = vector.shape_cast %20 : vector<1x8xf32> to vector<1x1x8xf32>
    %cst_9 = arith.constant dense<0.000000e+00> : vector<1xf32>
    %23 = vector.multi_reduction <add>, %22, %cst_9 [1, 2] : vector<1x1x8xf32> to vector<1xf32>
    %24 = vector.shape_cast %23 : vector<1xf32> to vector<1x1x1xf32>
    %25 = vector.extract %24[0, 0, 0] : f32 from vector<1x1x1xf32>
    %26 = vector.broadcast %25 : f32 to vector<1x1xf32>
    %27 = arith.addf %21, %26 : vector<1x1xf32>
    %c0_10 = arith.constant 0 : index
    %c0_11 = arith.constant 0 : index
    %28 = vector.load %arg2[%c0_10, %c0_11] : memref<1x1xf32, #tpu.memory_space<vmem>>, vector<1x1xf32>
    tpu.vector_store %arg2[%c0_10, %c0_11], %27 {strides = array<i32>} : memref<1x1xf32, #tpu.memory_space<vmem>>, vector<1x1xf32>,
    %c0_i32_12 = arith.constant 0 : i32
    %29 = arith.cmpi eq, %arg0, %c0_i32_12 : i32
    %30 = arith.extui %29 : i1 to i32
    %c0_i32_13 = arith.constant 0 : i32
    %31 = arith.cmpi ne, %30, %c0_i32_13 : i32
    scf.if %31 {
      %c0_14 = arith.constant 0 : index
      %c0_15 = arith.constant 0 : index
      %32 = vector.load %arg2[%c0_14, %c0_15] : memref<1x1xf32, #tpu.memory_space<vmem>>, vector<1x1xf32>
      %cst_16 = arith.constant 8.000000e+00 : f32
      %33 = vector.broadcast %cst_16 : f32 to vector<1x1xf32>
      %34 = arith.divf %32, %33 : vector<1x1xf32>
      %c0_17 = arith.constant 0 : index
      %c0_18 = arith.constant 0 : index
      %35 = vector.load %arg2[%c0_17, %c0_18] : memref<1x1xf32, #tpu.memory_space<vmem>>, vector<1x1xf32>
      tpu.vector_store %arg2[%c0_17, %c0_18], %34 {strides = array<i32>} : memref<1x1xf32, #tpu.memory_space<vmem>>, vector<1x1xf32>,
    } else {
    }
    return
  }
  func.func @transform_0(%arg0: i32) -> (i32, i32) {
    %c0_i32 = arith.constant 0 : i32
    %c0_i32_0 = arith.constant 0 : i32
    return %c0_i32, %arg0 : i32, i32
  }
  func.func @transform_1(%arg0: i32) -> (i32, i32) {
    %c0_i32 = arith.constant 0 : i32
    %c0_i32_0 = arith.constant 0 : i32
    %c0_i32_1 = arith.constant 0 : i32
    return %c0_i32, %c0_i32_0 : i32, i32
  }
}

</mosaic_0001>

<llo_original>
// kernel: tpu_custom_call.1
$region0: #{tpu_custom_call.1}
  #allocation0 [shape = 'u32[]', space=smem, size = 0x4, offset = 0x4, fixed_abs, tag = 'smem constant byte address 0x4 - core index']
  #allocation1 [shape = 'u32[144,128]{1,0:T(1,128)}', space=vmem, size = 0x12000, scoped, tag = 'internal scratch']
  %s0 = inlined_call_operand.vmem [shape: f32[16,8], index: 0, kind: input, shape index: {}]
  %s1 = inlined_call_operand.hbm [shape: f32[1,1], index: 1, kind: output, shape index: {}]
  %s2 = sld [smem:[#allocation0]]
  $region22: #{tpu_custom_call.1} parent=0
    _
  %s4 = ssub.s32 1, %s2
  %s5 = scalar_select 0, %s4, %s2
  $region1: #{tpu_custom_call.1} parent=0
    #allocation2 [shape = 'u8[512]{0}', space=vmem, size = 0x400, scoped, tag = 'output window, operand 0, single buffered']
    #allocation3 [shape = 's32[1]{0}', space=sflag, size = 0x4, scoped, tag = 'scoped memory for tpu_custom_call.1']
    %6 = vsyncpa [#allocation3], 0
    // Predicated region
    $region2: #{tpu_custom_call.1} parent=1 // pred_check
      _
    $region3: #{tpu_custom_call.1} parent=1 // pred_check_branch
      %8 = sbr.rel (0) target = $region5
    $region4: #{tpu_custom_call.1} parent=1 // pred_region
      _
    $region5: #{tpu_custom_call.1} parent=1 // pred_fallthru
      _
    %p9 = scmp.eq.s32.totalorder 0, 0
    // Predicated region
    $region6: #{tpu_custom_call.1} parent=1 // pred_check
      %p10 = pneg %p9
    $region7: #{tpu_custom_call.1} parent=1 // pred_check_branch
      %12 = sbr.rel (%p10) target = $region9
    $region8: #{tpu_custom_call.1} parent=1 // pred_region
      %vm13 = vcmask 0
      %14 = vst.msk [vmem:[#allocation2] sm:$0x1] %vm13, 0.0
    $region9: #{tpu_custom_call.1} parent=1 // pred_fallthru
      _
    %v15 = vld [vmem:[%s0] sm:$0xff]
    %v16 = vld [vmem:[%s0 + $0x8] sm:$0xff]
    %vm17 = vcmask 64512
    %v18 = vsel %vm17, %v15, inf
    %v19 = vsel %vm17, %v16, inf
    %v20 = vmin.f32 %v18, %v19
    %v21 = vrot.slane %v20, 4
    %v22 = vmin.f32 %v20, %v21
    %v23 = vrot.slane %v22, 2
    %v24 = vmin.f32 %v22, %v23
    %v25 = vrot.slane %v24, 1
    %v26 = vmin.f32 %v24, %v25
    %v27 = vsub.f32 %v15, %v26
    %v28 = vsub.f32 %v16, %v26
    %v29 = vmul.f32 %v27, -0.5
    %v30 = vmul.f32 %v28, -0.5
    %v31 = vmul.f32 %v29, 1.442695
    %v32 = vpow.pop %v31
    %v33 = vmul.f32 %v30, 1.442695
    %v34 = vpow.pop %v33
    %v35 = vsel %vm17, %v32, 0.0
    %v36 = vsel %vm17, %v34, 0.0
    %v37 = vadd.f32 %v35, %v36
    %v38 = vrot.slane %v37, 4
    %v39 = vadd.f32 %v37, %v38
    %v40 = vrot.slane %v39, 2
    %v41 = vadd.f32 %v39, %v40
    %v42 = vrot.slane %v41, 1
    %v43 = vadd.f32 %v41, %v42
    %v44 = vlog2.pop %v43
    %v45 = vmul.f32 %v44, 0.6931472
    %v46 = vmul.f32 %v45, 2.0
    %v47 = vsub.f32 %v26, %v46
    %v48 = vsub.f32 %v47, -5.7
    %v49 = vmax.f32 %v48, 0.0
    %v50 = vld [vmem:[#allocation2] sm:$0x1]
    %vm51 = vcmask 57344
    %v52 = vsel %vm51, %v49, 0.0
    %53 = vadd.xlane.f32.xlu0 %v52
    %v54 = vpop.xlane.xlu0 %53
    %v55 = vrot.slane %v54, 4
    %v56 = vadd.f32 %v54, %v55
    %v57 = vrot.slane %v56, 2
    %v58 = vadd.f32 %v56, %v57
    %v59 = vrot.slane %v58, 1
    %v60 = vadd.f32 %v58, %v59
    %s61 = vtos %v60
    %v62 = vstv %s61
    %v63 = vadd.f32 %v50, %v62
    %vm64 = vcmask 0
    %65 = vst.msk [vmem:[#allocation2] sm:$0x1] %vm64, %v63
    // Predicated region
    $region10: #{tpu_custom_call.1} parent=1 // pred_check
      %p66 = pneg %p9
    $region11: #{tpu_custom_call.1} parent=1 // pred_check_branch
      %68 = sbr.rel (%p66) target = $region13
    $region12: #{tpu_custom_call.1} parent=1 // pred_region
      %v69 = vld [vmem:[#allocation2] sm:$0x1]
      %v70 = vrcp.pop 8.0
      %v71 = vmul.f32 %v69, %v70
      %72 = vst.msk [vmem:[#allocation2] sm:$0x1] %vm64, %v71
    $region13: #{tpu_custom_call.1} parent=1 // pred_fallthru
      _
    // Predicated region
    $region14: #{tpu_custom_call.1} parent=1 // pred_check
      _
    $region15: #{tpu_custom_call.1} parent=1 // pred_check_branch
      %74 = sbr.rel (0) target = $region17
    $region16: #{tpu_custom_call.1} parent=1 // pred_region
      %s76 = ssub.s32 16, 16
      %77 = vsyncadd [#allocation3], %s76
      %s79 = sshll.u32 [#allocation2], 4
      %s80 = int_to_ptr.vmem [resolvable:$true] %s79
      %82 = dma.vmem_to_hbm [thread:$0]  %s80, 16, %s1, [#allocation3]
    $region17: #{tpu_custom_call.1} parent=1 // pred_fallthru
      _
    // Predicated region
    $region18: #{tpu_custom_call.1} parent=1 // pred_check
      _
    $region19: #{tpu_custom_call.1} parent=1 // pred_check_branch
      %84 = sbr.rel (0) target = $region21
    $region20: #{tpu_custom_call.1} parent=1 // pred_region
      %85 = dma.done [#allocation3], 16
    $region21: #{tpu_custom_call.1} parent=1 // pred_fallthru
      _
    %86 = vsyncpa [#allocation3], 1

</llo_original>
